<compile_context>
chip_gen: v5e
topology: v5e:2x2
jax: 0.10.0
libtpu: 0.0.40
codegen_flags: <defaults>
</compile_context>

<pallas_src>
import jax
import jax.numpy as jnp
from jax.experimental import pallas as pl
from jax.experimental.pallas import tpu as pltpu


def _cdiv(a, b):
    return -(-a // b)


# Per-output-block byte budgets (one cos or sin block).  With double buffering
# plus the in-kernel compact/expanded intermediates the worst-case VMEM
# footprint stays ~11 MiB (< v5e's 16 MiB scoped default).
_BLOCK_BYTES_SINGLE_TC = 2 * 1024 * 1024   # one big block: no useless steps on 1-TC chips
_BLOCK_BYTES_MULTI_TC = 1 * 1024 * 1024
_MIN_STEPS_MULTI_TC = 8                    # >= 4 pipelined steps per TensorCore on dual-TC chips


def _is_multi_tensorcore():
    """True when one JAX TPU device spans >1 TensorCore (v4/v5p megacore, v7x).

    v5e / v6e expose a single TensorCore per device; splitting the grid there
    only adds per-step overhead with zero benefit, so we keep a single block.
    """
    try:
        dev = jax.devices()[0]
        if dev.platform != "tpu":
            return False
        kind = dev.device_kind.lower()
        single_tc = ("lite" in kind or "v5e" in kind or "v6e" in kind
                     or "v2" in kind or "v3" in kind)
        return not single_tc
    except Exception:
        return False


def _positions_per_row(dim):
    """Logical cache rows packed into one output row.

    Chosen so the compact (unique-angle) tile is exactly 128 lanes wide when
    dim/2 divides 128 (dim = 16/32/64/128/256 -> P = 16/8/4/2/1, output rows
    of 256 lanes).  Fallback keeps correctness for any even dim.
    """
    half = dim // 2
    if half >= 1 and 128 % half == 0:
        return 128 // half
    if dim <= 128:
        return max(2, 2 * (128 // dim))
    return 1


def _choose_grid(rows, row_bytes, multi_core):
    """Pick (block_rows, grid_steps) for the packed cache build."""
    budget = _BLOCK_BYTES_MULTI_TC if multi_core else _BLOCK_BYTES_SINGLE_TC
    max_rows = max(8, (budget // row_bytes) // 8 * 8)
    steps = _cdiv(rows, max_rows)
    if multi_core:
        steps = max(steps, _MIN_STEPS_MULTI_TC)
    blk = _cdiv(rows, steps)
    blk = _cdiv(blk, 8) * 8                    # sublane-aligned; tail pad <= ~8 rows/step
    if blk >= rows:
        return rows, 1                         # one full-extent block (any row count is legal)
    return blk, _cdiv(rows, blk)


def _build_rope_cache(inv_freq, cache_len, dim, cache_dtype=jnp.float32):
    """Builds cos/sin caches of shape (cache_len, dim) with the Pallas kernel."""
    assert dim % 2 == 0, "rotary dim must be even"
    half = dim // 2
    P = _positions_per_row(dim)
    w_c = P * half                     # compact (unique-angle) lanes per packed row
    w_out = 2 * w_c                    # == P * dim output lanes per packed row

    rows = _cdiv(cache_len, P)
    row_bytes = w_out * jnp.dtype(cache_dtype).itemsize
    blk, steps = _choose_grid(rows, row_bytes, _is_multi_tensorcore())
    p_rows = blk * steps
    padded_len = P * p_rows

    # Host-built per-lane tables (both exact):
    #   row 0: position offset within a packed row -> lane u holds float(u // half)
    #   row 1: angle multiplier                    -> lane u holds inv_freq[u % half]
    invf = inv_freq.astype(jnp.float32)
    offs_lane = jnp.repeat(jnp.arange(P, dtype=jnp.float32), half)
    invf_lane = jnp.tile(invf, P)
    table = jnp.stack([offs_lane, invf_lane], axis=0)          # (2, w_c) f32

    def kernel(tab_ref, cos_ref, sin_ref):
        i = pl.program_id(0)
        blk_rows = cos_ref.shape[0]
        tab = tab_ref[...]
        # Base position of every packed row in this block, integer-exact
        # (int32 math, cast late; the offset add stays exact in f32).
        row = jax.lax.broadcasted_iota(jnp.int32, (blk_rows, 1), 0) + i * blk_rows
        base = (row * P).astype(jnp.float32)                    # (blk, 1)
        pos = base + tab[0:1, :]                                # (blk, w_c) exact positions
        angle = pos * tab[1:2, :]                               # == outer(t, inv_freq), packed
        cos_c = jnp.cos(angle)                                  # transcendentals on unique lanes only
        sin_c = jnp.sin(angle)

        def expand(c):
            # GPT-NeoX: emb = cat([freqs, freqs]) -> duplicate each `half`-lane group.
            parts = []
            for q in range(P):
                g = c[:, q * half:(q + 1) * half]
                parts.append(g)
                parts.append(g)
            return jnp.concatenate(parts, axis=-1)              # (blk, w_out)

        cos_ref[...] = expand(cos_c).astype(cos_ref.dtype)
        sin_ref[...] = expand(sin_c).astype(sin_ref.dtype)

    cos2, sin2 = pl.pallas_call(
        kernel,
        out_shape=(
            jax.ShapeDtypeStruct((p_rows, w_out), cache_dtype),
            jax.ShapeDtypeStruct((p_rows, w_out), cache_dtype),
        ),
        grid_spec=pltpu.PrefetchScalarGridSpec(
            num_scalar_prefetch=0,
            grid=(steps,),
            in_specs=[
                # Constant block index -> the ~1 KiB table is fetched once.
                pl.BlockSpec((2, w_c), lambda i: (0, 0)),
            ],
            out_specs=[
                pl.BlockSpec((blk, w_out), lambda i: (i, 0)),
                pl.BlockSpec((blk, w_out), lambda i: (i, 0)),
            ],
        ),
        compiler_params=pltpu.CompilerParams(
            dimension_semantics=("parallel",)),
    )(table)

    # (p_rows, P*dim) row-major is bit-identical to (P*p_rows, dim): free reshape.
    cos = cos2.reshape(padded_len, dim)
    sin = sin2.reshape(padded_len, dim)
    if padded_len != cache_len:                 # only for non-aligned cache lengths
        cos = cos[:cache_len]
        sin = sin[:cache_len]
    return cos, sin


class GPTNeoXRotaryEmbedding:
    """JAX/Pallas port of the PyTorch GPTNeoXRotaryEmbedding module."""

    def __init__(self, dim, max_position_embeddings=2048, base=10000,
                 cache_dtype=jnp.float32):
        self.dim = dim
        self.max_position_embeddings = max_position_embeddings
        self.base = base
        # bf16 halves the cache's HBM traffic if the attention consumer allows
        # it; default float32 matches the PyTorch module exactly.
        self.cache_dtype = cache_dtype
        # inv_freq = 1 / base^(arange(0, dim, 2)/dim), float32.
        exponent = jnp.arange(0, dim, 2, dtype=jnp.float32) / dim
        self.inv_freq = (1.0 / (jnp.float32(base) ** exponent)).astype(jnp.float32)
        self._set_cos_sin_cache(seq_len=max_position_embeddings)

    def _set_cos_sin_cache(self, seq_len):
        self.max_seq_len_cached = seq_len
        self.cos_cached, self.sin_cached = _build_rope_cache(
            self.inv_freq, seq_len, self.dim, cache_dtype=self.cache_dtype)

    def __call__(self, x, seq_len=None):
        if seq_len is None:
            seq_len = self.max_seq_len_cached
        if seq_len > self.max_seq_len_cached:
            self._set_cos_sin_cache(seq_len=seq_len)
        return (self.cos_cached[:seq_len], self.sin_cached[:seq_len])


if __name__ == "__main__":
    key = jax.random.PRNGKey(0)

    dim = 64                      # rotary head dim
    max_pos = 128                 # max_position_embeddings (kept small)
    seq_len = 8                   # query length
    batch, hidden = 2, 32

    # x only supplies dtype/device in the original module; build a small input.
    x = jax.random.normal(key, (batch, seq_len, hidden), dtype=jnp.float32)

    rope = GPTNeoXRotaryEmbedding(dim, max_position_embeddings=max_pos, base=10000)
    cos, sin = rope(x, seq_len=seq_len)
    cos = jax.block_until_ready(cos)
    sin = jax.block_until_ready(sin)

    # Reference check in plain JAX (mirrors the PyTorch math).
    t = jnp.arange(max_pos, dtype=jnp.float32)
    freqs = jnp.outer(t, rope.inv_freq)
    emb = jnp.concatenate([freqs, freqs], axis=-1)
    cos_ref = jnp.cos(emb)[:seq_len]
    sin_ref = jnp.sin(emb)[:seq_len]

    assert cos.shape == (seq_len, dim) and sin.shape == (seq_len, dim)
    assert jnp.allclose(cos, cos_ref, atol=1e-5, rtol=1e-5)
    assert jnp.allclose(sin, sin_ref, atol=1e-5, rtol=1e-5)

    print("KERNEL_OK")
</pallas_src>

<mosaic_0001>
module attributes {stable_mosaic.version = 11 : i64} {
  func.func @kernel(%arg0: i32, %arg1: memref<2x128xf32, #tpu.memory_space<vmem>>, %arg2: memref<32x256xf32, #tpu.memory_space<vmem>>, %arg3: memref<32x256xf32, #tpu.memory_space<vmem>>) attributes {dimension_semantics = [#tpu.dimension_semantics<parallel>], iteration_bounds = array<i64: 1>, scalar_prefetch = 0 : i64, scratch_operands = 0 : i64, tpu.core_type = #tpu.core_type<tc>, window_params = [{pipeline_mode = #tpu.pipeline_mode<synchronous>, transform_indices = @transform_0, window_bounds = array<i64: 2, 128>}, {transform_indices = @transform_1, window_bounds = array<i64: 32, 256>}, {transform_indices = @transform_2, window_bounds = array<i64: 32, 256>}]} {
    %c0 = arith.constant 0 : index
    %c0_0 = arith.constant 0 : index
    %0 = vector.load %arg1[%c0, %c0_0] : memref<2x128xf32, #tpu.memory_space<vmem>>, vector<2x128xf32>
    %1 = tpu.iota {dimensions = array<i32: 0>} : vector<32x1xi32>
    %c32_i32 = arith.constant 32 : i32
    %2 = arith.muli %arg0, %c32_i32 : i32
    %3 = vector.broadcast %2 : i32 to vector<32x1xi32>
    %4 = arith.addi %1, %3 : vector<32x1xi32>
    %c4_i32 = arith.constant 4 : i32
    %5 = vector.broadcast %c4_i32 : i32 to vector<32x1xi32>
    %6 = arith.muli %4, %5 : vector<32x1xi32>
    %7 = arith.sitofp %6 : vector<32x1xi32> to vector<32x1xf32>
    %8 = vector.extract_strided_slice %0 {offsets = [0, 0], sizes = [1, 128], strides = [1, 1]} : vector<2x128xf32> to vector<1x128xf32>
    %9 = vector.broadcast %7 : vector<32x1xf32> to vector<32x128xf32>
    %10 = vector.broadcast %8 : vector<1x128xf32> to vector<32x128xf32>
    %11 = arith.addf %9, %10 : vector<32x128xf32>
    %12 = vector.extract_strided_slice %0 {offsets = [1, 0], sizes = [1, 128], strides = [1, 1]} : vector<2x128xf32> to vector<1x128xf32>
    %13 = vector.broadcast %12 : vector<1x128xf32> to vector<32x128xf32>
    %14 = arith.mulf %11, %13 : vector<32x128xf32>
    %15 = math.cos %14 : vector<32x128xf32>
    %16 = math.sin %14 : vector<32x128xf32>
    %17 = vector.extract_strided_slice %15 {offsets = [0, 0], sizes = [32, 32], strides = [1, 1]} : vector<32x128xf32> to vector<32x32xf32>
    %18 = vector.extract_strided_slice %15 {offsets = [0, 32], sizes = [32, 32], strides = [1, 1]} : vector<32x128xf32> to vector<32x32xf32>
    %19 = vector.extract_strided_slice %15 {offsets = [0, 64], sizes = [32, 32], strides = [1, 1]} : vector<32x128xf32> to vector<32x32xf32>
    %20 = vector.extract_strided_slice %15 {offsets = [0, 96], sizes = [32, 32], strides = [1, 1]} : vector<32x128xf32> to vector<32x32xf32>
    %21 = tpu.concatenate %17, %17, %18, %18, %19, %19, %20, %20 in 1 : vector<32x32xf32>, vector<32x32xf32>, vector<32x32xf32>, vector<32x32xf32>, vector<32x32xf32>, vector<32x32xf32>, vector<32x32xf32>, vector<32x32xf32> -> vector<32x256xf32>
    %c0_1 = arith.constant 0 : index
    %c0_2 = arith.constant 0 : index
    %22 = vector.load %arg2[%c0_1, %c0_2] : memref<32x256xf32, #tpu.memory_space<vmem>>, vector<32x256xf32>
    tpu.vector_store %arg2[%c0_1, %c0_2], %21 {strides = array<i32>} : memref<32x256xf32, #tpu.memory_space<vmem>>, vector<32x256xf32>,
    %23 = vector.extract_strided_slice %16 {offsets = [0, 0], sizes = [32, 32], strides = [1, 1]} : vector<32x128xf32> to vector<32x32xf32>
    %24 = vector.extract_strided_slice %16 {offsets = [0, 32], sizes = [32, 32], strides = [1, 1]} : vector<32x128xf32> to vector<32x32xf32>
    %25 = vector.extract_strided_slice %16 {offsets = [0, 64], sizes = [32, 32], strides = [1, 1]} : vector<32x128xf32> to vector<32x32xf32>
    %26 = vector.extract_strided_slice %16 {offsets = [0, 96], sizes = [32, 32], strides = [1, 1]} : vector<32x128xf32> to vector<32x32xf32>
    %27 = tpu.concatenate %23, %23, %24, %24, %25, %25, %26, %26 in 1 : vector<32x32xf32>, vector<32x32xf32>, vector<32x32xf32>, vector<32x32xf32>, vector<32x32xf32>, vector<32x32xf32>, vector<32x32xf32>, vector<32x32xf32> -> vector<32x256xf32>
    %c0_3 = arith.constant 0 : index
    %c0_4 = arith.constant 0 : index
    %28 = vector.load %arg3[%c0_3, %c0_4] : memref<32x256xf32, #tpu.memory_space<vmem>>, vector<32x256xf32>
    tpu.vector_store %arg3[%c0_3, %c0_4], %27 {strides = array<i32>} : memref<32x256xf32, #tpu.memory_space<vmem>>, vector<32x256xf32>,
    return
  }
  func.func @transform_0(%arg0: i32) -> (i32, i32) {
    %c0_i32 = arith.constant 0 : i32
    %c0_i32_0 = arith.constant 0 : i32
    %c0_i32_1 = arith.constant 0 : i32
    return %c0_i32, %c0_i32_0 : i32, i32
  }
  func.func @transform_1(%arg0: i32) -> (i32, i32) {
    %c0_i32 = arith.constant 0 : i32
    %c0_i32_0 = arith.constant 0 : i32
    return %arg0, %c0_i32 : i32, i32
  }
  func.func @transform_2(%arg0: i32) -> (i32, i32) {
    %c0_i32 = arith.constant 0 : i32
    %c0_i32_0 = arith.constant 0 : i32
    return %arg0, %c0_i32 : i32, i32
  }
}

</mosaic_0001>

<llo_original>
// kernel: tpu_custom_call.1
$region0: #{tpu_custom_call.1}
  #allocation0 [shape = 'u32[]', space=smem, size = 0x4, offset = 0x4, fixed_abs, tag = 'smem constant byte address 0x4 - core index']
  #allocation1 [shape = 'u32[72,128]{1,0:T(1,128)}', space=vmem, size = 0x9000, scoped, tag = 'internal scratch']
  %s0 = inlined_call_operand.hbm [shape: f32[2,128], index: 0, kind: input, shape index: {}]
  %s1 = inlined_call_operand.hbm [shape: f32[32,256], index: 1, kind: output, shape index: {0}]
  %s2 = inlined_call_operand.hbm [shape: f32[32,256], index: 2, kind: output, shape index: {1}]
  %3 = xla_tuple %s1, %s2
  %s4 = sld [smem:[#allocation0]]
  $region26: #{tpu_custom_call.1} parent=0
    _
  %s6 = ssub.s32 1, %s4
  %s7 = scalar_select 0, %s6, %s4
  $region1: #{tpu_custom_call.1} parent=0
    #allocation2 [shape = 'u8[1024]{0}', space=vmem, size = 0x400, scoped, tag = 'input window, operand 0, single buffered']
    #allocation3 [shape = 's32[1]{0}', space=sflag, size = 0x4, scoped, tag = 'scoped memory for tpu_custom_call.1']
    #allocation4 [shape = 's32[1]{0}', space=sflag, size = 0x4, scoped, tag = 'scoped memory for tpu_custom_call.1']
    #allocation5 [shape = 'u8[32768]{0}', space=vmem, size = 0x8000, scoped, tag = 'output window, operand 0, single buffered']
    #allocation6 [shape = 'u8[32768]{0}', space=vmem, size = 0x8000, scoped, tag = 'output window, operand 1, single buffered']
    #allocation7 [shape = 's32[1]{0}', space=sflag, size = 0x4, scoped, tag = 'scoped memory for tpu_custom_call.1']
    %8 = vsyncpa [#allocation3], 0
    %9 = vsyncpa [#allocation4], 0
    %10 = vsyncpa [#allocation7], 0
    // Predicated region
    $region2: #{tpu_custom_call.1} parent=1 // pred_check
      _
    $region3: #{tpu_custom_call.1} parent=1 // pred_check_branch
      %12 = sbr.rel (0) target = $region5
    $region4: #{tpu_custom_call.1} parent=1 // pred_region
      %14 = vsyncadd [#allocation3], 0
      %s16 = sshll.u32 %s0, 4
      %s17 = int_to_ptr.hbm [resolvable:$true] %s16
      %s18 = sshll.u32 [#allocation2], 4
      %s19 = int_to_ptr.vmem [resolvable:$true] %s18
      %21 = dma.hbm_to_vmem [thread:$0]  %s17, 32, %s19, [#allocation3]
    $region5: #{tpu_custom_call.1} parent=1 // pred_fallthru
      _
    // Predicated region
    $region6: #{tpu_custom_call.1} parent=1 // pred_check
      _
    $region7: #{tpu_custom_call.1} parent=1 // pred_check_branch
      %23 = sbr.rel (0) target = $region9
    $region8: #{tpu_custom_call.1} parent=1 // pred_region
      %25 = dma.done [#allocation3], 32
    $region9: #{tpu_custom_call.1} parent=1 // pred_fallthru
      _
    %v26 = vld [vmem:[#allocation2] sm:$0x3]
    %v27 = vlaneseq
    %v28 = vshrl.u32 %v27, 7
    %v29 = vadd.s32 %v28, 8
    %v30 = vadd.s32 %v28, 16
    %v31 = vadd.s32 %v28, 24
    %s32 = smul.u32 0, 32
    %v33 = vstv %s32
    %v34 = vadd.s32 %v28, %v33
    %v35 = vadd.s32 %v29, %v33
    %v36 = vadd.s32 %v30, %v33
    %v37 = vadd.s32 %v31, %v33
    %v38 = vmul.u32 %v34, 4
    %v39 = vmul.u32 %v35, 4
    %v40 = vmul.u32 %v36, 4
    %v41 = vmul.u32 %v37, 4
    %v42 = vcvt.s32.f32 %v38
    %v43 = vcvt.s32.f32 %v39
    %v44 = vcvt.s32.f32 %v40
    %v45 = vcvt.s32.f32 %v41
    %v46 = vperm.slane %v26, 0
    %v47 = vadd.f32 %v42, %v46
    %v48 = vadd.f32 %v43, %v46
    %v49 = vadd.f32 %v44, %v46
    %v50 = vadd.f32 %v45, %v46
    %v51 = vperm.slane %v26, 1
    %v52 = vmul.f32 %v47, %v51
    %v53 = vmul.f32 %v48, %v51
    %v54 = vmul.f32 %v49, %v51
    %v55 = vmul.f32 %v50, %v51
    %v56 = vand.u32 2147483647, %v52
    %vm57 = vcmp.le.f32.partialorder %v56, 0.7853982
    %vm58 = vcmp.lt.s32.totalorder %v52, 0
    %v59 = vand.u32 %v52, 2139095040
    %v60 = vshrl.u32 %v59, 23
    %v61 = vsub.s32 %v60, 127
    %v62 = vand.u32 2147483647, %v52
    %v63 = vand.u32 %v62, 8388607
    %v64 = vor.u32 %v63, 8388608
    %v65 = vsub.s32 0, %v64
    %v66 = vadd.s32 %v61, 1
    %vm67 = vcmp.gt.s32.totalorder %v66, 0
    %v68 = vsel %vm67, %v66, 0
    %v69 = vshrl.u32 %v68, 5
    %v70 = vand.u32 %v68, 31
    %v71 = vsub.s32 32, %v70
    %v72 = vshrl.u32 683565275, %v71
    %v73 = vshll.u32 683565275, %v70
    %v74 = vshrl.u32 2475754826, %v71
    %v75 = vor.u32 %v73, %v74
    %v76 = vshll.u32 2475754826, %v70
    %v77 = vshrl.u32 2131351028, %v71
    %v78 = vor.u32 %v76, %v77
    %v79 = vshll.u32 2131351028, %v70
    %v80 = vshrl.u32 2102212464, %v71
    %v81 = vor.u32 %v79, %v80
    %v82 = vshll.u32 2102212464, %v70
    %v83 = vshrl.u32 920167782, %v71
    %v84 = vor.u32 %v82, %v83
    %v85 = vshll.u32 920167782, %v70
    %v86 = vshrl.u32 1326507024, %v71
    %v87 = vor.u32 %v85, %v86
    %vm88 = vcmp.lt.s32.totalorder %v69, 1
    %vm89 = vcmp.lt.s32.totalorder %v69, 2
    %vm90 = vcmp.lt.s32.totalorder %v69, 3
    %vm91 = vcmp.lt.s32.totalorder %v69, 4
    %v92 = vsel %vm88, %v72, %v75
    %v93 = vsel %vm91, %v81, 2102212464
    %v94 = vsel %vm90, %v78, %v93
    %v95 = vsel %vm89, %v92, %v94
    %v96 = vsel %vm88, %v75, %v78
    %v97 = vsel %vm91, %v84, 920167782
    %v98 = vsel %vm90, %v81, %v97
    %v99 = vsel %vm89, %v96, %v98
    %v100 = vsel %vm88, %v78, %v81
    %v101 = vsel %vm91, %v87, 1326507024
    %v102 = vsel %vm90, %v84, %v101
    %v103 = vsel %vm89, %v100, %v102
    %v104 = vshll.u32 %v64, 8
    %v105 = vand.u32 %v104, 65535
    %v106 = vshrl.u32 %v104, 16
    %v107 = vand.u32 %v103, 65535
    %v108 = vshrl.u32 %v103, 16
    %v109 = vmul.u32 %v105, %v107
    %v110 = vmul.u32 %v105, %v108
    %v111 = vmul.u32 %v106, %v107
    %v112 = vmul.u32 %v106, %v108
    %v113 = vshll.u32 %v110, 16
    %v114 = vshrl.u32 %v110, 16
    %v115 = vshll.u32 %v111, 16
    %v116 = vshrl.u32 %v111, 16
    %vm117 = vc.u32 %v109, %v113
    %v118 = vsel %vm117, 1, 0
    %v119 = vadd.s32 %v109, %v113
    %v120 = vadd.s32 %v112, %v118
    %vm121 = vc.u32 %v119, %v115
    %v122 = vsel %vm121, 1, 0
    %v123 = vadd.s32 %v119, %v115
    %v124 = vadd.s32 %v120, %v122
    %v125 = vadd.s32 %v124, %v114
    %v126 = vadd.s32 %v125, %v116
    %v127 = vand.u32 %v104, 65535
    %v128 = vshrl.u32 %v104, 16
    %v129 = vand.u32 %v99, 65535
    %v130 = vshrl.u32 %v99, 16
    %v131 = vmul.u32 %v127, %v129
    %v132 = vmul.u32 %v127, %v130
    %v133 = vmul.u32 %v128, %v129
    %v134 = vmul.u32 %v128, %v130
    %v135 = vshll.u32 %v132, 16
    %v136 = vshrl.u32 %v132, 16
    %v137 = vshll.u32 %v133, 16
    %v138 = vshrl.u32 %v133, 16
    %vm139 = vc.u32 %v131, %v135
    %v140 = vsel %vm139, 1, 0
    %v141 = vadd.s32 %v131, %v135
    %v142 = vadd.s32 %v134, %v140
    %vm143 = vc.u32 %v141, %v137
    %v144 = vsel %vm143, 1, 0
    %v145 = vadd.s32 %v141, %v137
    %v146 = vadd.s32 %v142, %v144
    %v147 = vadd.s32 %v146, %v136
    %v148 = vadd.s32 %v147, %v138
    %v149 = vmul.u32 %v104, %v95
    %v150 = vadd.s32 %v126, %v145
    %vm151 = vc.u32 %v126, %v145
    %v152 = vadd.s32 %v148, 1
    %v153 = vsel %vm151, %v152, %v148
    %v154 = vadd.s32 %v149, %v153
    %v155 = vadd.s32 %v154, 536870912
    %v156 = vshrl.u32 %v155, 30
    %v157 = vshll.u32 %v156, 30
    %v158 = vsub.s32 %v154, %v157
    %vm159 = vcmp.lt.s32.totalorder %v158, 0
    %v160 = vsub.s32 0, %v158
    %v161 = vsel %vm159, %v160, %v158
    %v162 = vclz %v161
    %v163 = vsub.s32 %v162, 2
    %vm164 = vcmp.gt.s32.totalorder 0, %v163
    %v165 = vsel %vm164, 0, %v163
    %v166 = vsub.s32 32, %v165
    %v167 = vshll.u32 %v158, %v165
    %v168 = vshrl.u32 %v150, %v166
    %v169 = vor.u32 %v167, %v168
    %v170 = vsub.s32 4294967266, %v165
    %v171 = vadd.s32 %v170, 127
    %v172 = vshll.u32 %v171, 23
    %v173 = vor.u32 4788187, %v172
    %v174 = vand.u32 2147483647, %v173
    %v176 = vcvt.s32.f32 %v169
    %v177 = vmul.f32 %v176, %v174
    %v178 = vxor.u32 %v177, 2147483648
    %v179 = vsel %vm58, %v178, %v177
    %v180 = vsub.s32 4, %v156
    %v181 = vsel %vm58, %v180, %v156
    %v182 = vsel %vm57, %v52, %v179
    %v183 = vsel %vm57, 0, %v181
    %v184 = vmul.f32 %v182, %v182
    %v185 = vmul.f32 %v184, -0.001358992
    %v186 = vadd.f32 %v185, 0.041655596
    %v187 = vmul.f32 %v184, %v186
    %v188 = vadd.f32 %v187, -0.4999988
    %v189 = vmul.f32 %v184, %v188
    %v190 = vadd.f32 1.0, %v189
    %v191 = vmul.f32 %v182, %v182
    %v192 = vmul.f32 %v191, -0.00019511016
    %v193 = vadd.f32 %v192, 0.008332121
    %v194 = vmul.f32 %v191, %v193
    %v195 = vadd.f32 %v194, -0.16666654
    %v196 = vmul.f32 %v191, %v195
    %v197 = vadd.f32 %v196, 1.0
    %v198 = vmul.f32 %v197, %v182
    %vm199 = vweird.f32 %v52
    %v200 = vand.u32 %v183, 3
    %vm201 = vcmp.lt.s32.totalorder %v200, 2
    %vm202 = vcmp.eq.s32.totalorder %v200, 0
    %v203 = vxor.u32 %v198, 2147483648
    %v204 = vsel %vm202, %v190, %v203
    %vm205 = vcmp.eq.s32.totalorder %v200, 2
    %v206 = vxor.u32 %v190, 2147483648
    %v207 = vsel %vm205, %v206, %v198
    %v208 = vsel %vm201, %v204, %v207
    %v209 = vsel %vm199, nan, %v208
    %v210 = vand.u32 2147483647, %v53
    %vm211 = vcmp.le.f32.partialorder %v210, 0.7853982
    %vm212 = vcmp.lt.s32.totalorder %v53, 0
    %v213 = vand.u32 %v53, 2139095040
    %v214 = vshrl.u32 %v213, 23
    %v215 = vsub.s32 %v214, 127
    %v216 = vand.u32 2147483647, %v53
    %v217 = vand.u32 %v216, 8388607
    %v218 = vor.u32 %v217, 8388608
    %v219 = vsub.s32 0, %v218
    %v220 = vadd.s32 %v215, 1
    %vm221 = vcmp.gt.s32.totalorder %v220, 0
    %v222 = vsel %vm221, %v220, 0
    %v223 = vshrl.u32 %v222, 5
    %v224 = vand.u32 %v222, 31
    %v225 = vsub.s32 32, %v224
    %v226 = vshrl.u32 683565275, %v225
    %v227 = vshll.u32 683565275, %v224
    %v228 = vshrl.u32 2475754826, %v225
    %v229 = vor.u32 %v227, %v228
    %v230 = vshll.u32 2475754826, %v224
    %v231 = vshrl.u32 2131351028, %v225
    %v232 = vor.u32 %v230, %v231
    %v233 = vshll.u32 2131351028, %v224
    %v234 = vshrl.u32 2102212464, %v225
    %v235 = vor.u32 %v233, %v234
    %v236 = vshll.u32 2102212464, %v224
    %v237 = vshrl.u32 920167782, %v225
    %v238 = vor.u32 %v236, %v237
    %v239 = vshll.u32 920167782, %v224
    %v240 = vshrl.u32 1326507024, %v225
    %v241 = vor.u32 %v239, %v240
    %vm242 = vcmp.lt.s32.totalorder %v223, 1
    %vm243 = vcmp.lt.s32.totalorder %v223, 2
    %vm244 = vcmp.lt.s32.totalorder %v223, 3
    %vm245 = vcmp.lt.s32.totalorder %v223, 4
    %v246 = vsel %vm242, %v226, %v229
    %v247 = vsel %vm245, %v235, 2102212464
    %v248 = vsel %vm244, %v232, %v247
    %v249 = vsel %vm243, %v246, %v248
    %v250 = vsel %vm242, %v229, %v232
    %v251 = vsel %vm245, %v238, 920167782
    %v252 = vsel %vm244, %v235, %v251
    %v253 = vsel %vm243, %v250, %v252
    %v254 = vsel %vm242, %v232, %v235
    %v255 = vsel %vm245, %v241, 1326507024
    %v256 = vsel %vm244, %v238, %v255
    %v257 = vsel %vm243, %v254, %v256
    %v258 = vshll.u32 %v218, 8
    %v259 = vand.u32 %v258, 65535
    %v260 = vshrl.u32 %v258, 16
    %v261 = vand.u32 %v257, 65535
    %v262 = vshrl.u32 %v257, 16
    %v263 = vmul.u32 %v259, %v261
    %v264 = vmul.u32 %v259, %v262
    %v265 = vmul.u32 %v260, %v261
    %v266 = vmul.u32 %v260, %v262
    %v267 = vshll.u32 %v264, 16
    %v268 = vshrl.u32 %v264, 16
    %v269 = vshll.u32 %v265, 16
    %v270 = vshrl.u32 %v265, 16
    %vm271 = vc.u32 %v263, %v267
    %v272 = vsel %vm271, 1, 0
    %v273 = vadd.s32 %v263, %v267
    %v274 = vadd.s32 %v266, %v272
    %vm275 = vc.u32 %v273, %v269
    %v276 = vsel %vm275, 1, 0
    %v277 = vadd.s32 %v273, %v269
    %v278 = vadd.s32 %v274, %v276
    %v279 = vadd.s32 %v278, %v268
    %v280 = vadd.s32 %v279, %v270
    %v281 = vand.u32 %v258, 65535
    %v282 = vshrl.u32 %v258, 16
    %v283 = vand.u32 %v253, 65535
    %v284 = vshrl.u32 %v253, 16
    %v285 = vmul.u32 %v281, %v283
    %v286 = vmul.u32 %v281, %v284
    %v287 = vmul.u32 %v282, %v283
    %v288 = vmul.u32 %v282, %v284
    %v289 = vshll.u32 %v286, 16
    %v290 = vshrl.u32 %v286, 16
    %v291 = vshll.u32 %v287, 16
    %v292 = vshrl.u32 %v287, 16
    %vm293 = vc.u32 %v285, %v289
    %v294 = vsel %vm293, 1, 0
    %v295 = vadd.s32 %v285, %v289
    %v296 = vadd.s32 %v288, %v294
    %vm297 = vc.u32 %v295, %v291
    %v298 = vsel %vm297, 1, 0
    %v299 = vadd.s32 %v295, %v291
    %v300 = vadd.s32 %v296, %v298
    %v301 = vadd.s32 %v300, %v290
    %v302 = vadd.s32 %v301, %v292
    %v303 = vmul.u32 %v258, %v249
    %v304 = vadd.s32 %v280, %v299
    %vm305 = vc.u32 %v280, %v299
    %v306 = vadd.s32 %v302, 1
    %v307 = vsel %vm305, %v306, %v302
    %v308 = vadd.s32 %v303, %v307
    %v309 = vadd.s32 %v308, 536870912
    %v310 = vshrl.u32 %v309, 30
    %v311 = vshll.u32 %v310, 30
    %v312 = vsub.s32 %v308, %v311
    %vm313 = vcmp.lt.s32.totalorder %v312, 0
    %v314 = vsub.s32 0, %v312
    %v315 = vsel %vm313, %v314, %v312
    %v316 = vclz %v315
    %v317 = vsub.s32 %v316, 2
    %vm318 = vcmp.gt.s32.totalorder 0, %v317
    %v319 = vsel %vm318, 0, %v317
    %v320 = vsub.s32 32, %v319
    %v321 = vshll.u32 %v312, %v319
    %v322 = vshrl.u32 %v304, %v320
    %v323 = vor.u32 %v321, %v322
    %v324 = vsub.s32 4294967266, %v319
    %v325 = vadd.s32 %v324, 127
    %v326 = vshll.u32 %v325, 23
    %v327 = vor.u32 4788187, %v326
    %v328 = vand.u32 2147483647, %v327
    %v330 = vcvt.s32.f32 %v323
    %v331 = vmul.f32 %v330, %v328
    %v332 = vxor.u32 %v331, 2147483648
    %v333 = vsel %vm212, %v332, %v331
    %v334 = vsub.s32 4, %v310
    %v335 = vsel %vm212, %v334, %v310
    %v336 = vsel %vm211, %v53, %v333
    %v337 = vsel %vm211, 0, %v335
    %v338 = vmul.f32 %v336, %v336
    %v339 = vmul.f32 %v338, -0.001358992
    %v340 = vadd.f32 %v339, 0.041655596
    %v341 = vmul.f32 %v338, %v340
    %v342 = vadd.f32 %v341, -0.4999988
    %v343 = vmul.f32 %v338, %v342
    %v344 = vadd.f32 1.0, %v343
    %v345 = vmul.f32 %v336, %v336
    %v346 = vmul.f32 %v345, -0.00019511016
    %v347 = vadd.f32 %v346, 0.008332121
    %v348 = vmul.f32 %v345, %v347
    %v349 = vadd.f32 %v348, -0.16666654
    %v350 = vmul.f32 %v345, %v349
    %v351 = vadd.f32 %v350, 1.0
    %v352 = vmul.f32 %v351, %v336
    %vm353 = vweird.f32 %v53
    %v354 = vand.u32 %v337, 3
    %vm355 = vcmp.lt.s32.totalorder %v354, 2
    %vm356 = vcmp.eq.s32.totalorder %v354, 0
    %v357 = vxor.u32 %v352, 2147483648
    %v358 = vsel %vm356, %v344, %v357
    %vm359 = vcmp.eq.s32.totalorder %v354, 2
    %v360 = vxor.u32 %v344, 2147483648
    %v361 = vsel %vm359, %v360, %v352
    %v362 = vsel %vm355, %v358, %v361
    %v363 = vsel %vm353, nan, %v362
    %v364 = vand.u32 2147483647, %v54
    %vm365 = vcmp.le.f32.partialorder %v364, 0.7853982
    %vm366 = vcmp.lt.s32.totalorder %v54, 0
    %v367 = vand.u32 %v54, 2139095040
    %v368 = vshrl.u32 %v367, 23
    %v369 = vsub.s32 %v368, 127
    %v370 = vand.u32 2147483647, %v54
    %v371 = vand.u32 %v370, 8388607
    %v372 = vor.u32 %v371, 8388608
    %v373 = vsub.s32 0, %v372
    %v374 = vadd.s32 %v369, 1
    %vm375 = vcmp.gt.s32.totalorder %v374, 0
    %v376 = vsel %vm375, %v374, 0
    %v377 = vshrl.u32 %v376, 5
    %v378 = vand.u32 %v376, 31
    %v379 = vsub.s32 32, %v378
    %v380 = vshrl.u32 683565275, %v379
    %v381 = vshll.u32 683565275, %v378
    %v382 = vshrl.u32 2475754826, %v379
    %v383 = vor.u32 %v381, %v382
    %v384 = vshll.u32 2475754826, %v378
    %v385 = vshrl.u32 2131351028, %v379
    %v386 = vor.u32 %v384, %v385
    %v387 = vshll.u32 2131351028, %v378
    %v388 = vshrl.u32 2102212464, %v379
    %v389 = vor.u32 %v387, %v388
    %v390 = vshll.u32 2102212464, %v378
    %v391 = vshrl.u32 920167782, %v379
    %v392 = vor.u32 %v390, %v391
    %v393 = vshll.u32 920167782, %v378
    %v394 = vshrl.u32 1326507024, %v379
    %v395 = vor.u32 %v393, %v394
    %vm396 = vcmp.lt.s32.totalorder %v377, 1
    %vm397 = vcmp.lt.s32.totalorder %v377, 2
    %vm398 = vcmp.lt.s32.totalorder %v377, 3
    %vm399 = vcmp.lt.s32.totalorder %v377, 4
    %v400 = vsel %vm396, %v380, %v383
    %v401 = vsel %vm399, %v389, 2102212464
    %v402 = vsel %vm398, %v386, %v401
    %v403 = vsel %vm397, %v400, %v402
    %v404 = vsel %vm396, %v383, %v386
    %v405 = vsel %vm399, %v392, 920167782
    %v406 = vsel %vm398, %v389, %v405
    %v407 = vsel %vm397, %v404, %v406
    %v408 = vsel %vm396, %v386, %v389
    %v409 = vsel %vm399, %v395, 1326507024
    %v410 = vsel %vm398, %v392, %v409
    %v411 = vsel %vm397, %v408, %v410
    %v412 = vshll.u32 %v372, 8
    %v413 = vand.u32 %v412, 65535
    %v414 = vshrl.u32 %v412, 16
    %v415 = vand.u32 %v411, 65535
    %v416 = vshrl.u32 %v411, 16
    %v417 = vmul.u32 %v413, %v415
    %v418 = vmul.u32 %v413, %v416
    %v419 = vmul.u32 %v414, %v415
    %v420 = vmul.u32 %v414, %v416
    %v421 = vshll.u32 %v418, 16
    %v422 = vshrl.u32 %v418, 16
    %v423 = vshll.u32 %v419, 16
    %v424 = vshrl.u32 %v419, 16
    %vm425 = vc.u32 %v417, %v421
    %v426 = vsel %vm425, 1, 0
    %v427 = vadd.s32 %v417, %v421
    %v428 = vadd.s32 %v420, %v426
    %vm429 = vc.u32 %v427, %v423
    %v430 = vsel %vm429, 1, 0
    %v431 = vadd.s32 %v427, %v423
    %v432 = vadd.s32 %v428, %v430
    %v433 = vadd.s32 %v432, %v422
    %v434 = vadd.s32 %v433, %v424
    %v435 = vand.u32 %v412, 65535
    %v436 = vshrl.u32 %v412, 16
    %v437 = vand.u32 %v407, 65535
    %v438 = vshrl.u32 %v407, 16
    %v439 = vmul.u32 %v435, %v437
    %v440 = vmul.u32 %v435, %v438
    %v441 = vmul.u32 %v436, %v437
    %v442 = vmul.u32 %v436, %v438
    %v443 = vshll.u32 %v440, 16
    %v444 = vshrl.u32 %v440, 16
    %v445 = vshll.u32 %v441, 16
    %v446 = vshrl.u32 %v441, 16
    %vm447 = vc.u32 %v439, %v443
    %v448 = vsel %vm447, 1, 0
    %v449 = vadd.s32 %v439, %v443
    %v450 = vadd.s32 %v442, %v448
    %vm451 = vc.u32 %v449, %v445
    %v452 = vsel %vm451, 1, 0
    %v453 = vadd.s32 %v449, %v445
    %v454 = vadd.s32 %v450, %v452
    %v455 = vadd.s32 %v454, %v444
    %v456 = vadd.s32 %v455, %v446
    %v457 = vmul.u32 %v412, %v403
    %v458 = vadd.s32 %v434, %v453
    %vm459 = vc.u32 %v434, %v453
    %v460 = vadd.s32 %v456, 1
    %v461 = vsel %vm459, %v460, %v456
    %v462 = vadd.s32 %v457, %v461
    %v463 = vadd.s32 %v462, 536870912
    %v464 = vshrl.u32 %v463, 30
    %v465 = vshll.u32 %v464, 30
    %v466 = vsub.s32 %v462, %v465
    %vm467 = vcmp.lt.s32.totalorder %v466, 0
    %v468 = vsub.s32 0, %v466
    %v469 = vsel %vm467, %v468, %v466
    %v470 = vclz %v469
    %v471 = vsub.s32 %v470, 2
    %vm472 = vcmp.gt.s32.totalorder 0, %v471
    %v473 = vsel %vm472, 0, %v471
    %v474 = vsub.s32 32, %v473
    %v475 = vshll.u32 %v466, %v473
    %v476 = vshrl.u32 %v458, %v474
    %v477 = vor.u32 %v475, %v476
    %v478 = vsub.s32 4294967266, %v473
    %v479 = vadd.s32 %v478, 127
    %v480 = vshll.u32 %v479, 23
    %v481 = vor.u32 4788187, %v480
    %v482 = vand.u32 2147483647, %v481
    %v484 = vcvt.s32.f32 %v477
    %v485 = vmul.f32 %v484, %v482
    %v486 = vxor.u32 %v485, 2147483648
    %v487 = vsel %vm366, %v486, %v485
    %v488 = vsub.s32 4, %v464
    %v489 = vsel %vm366, %v488, %v464
    %v490 = vsel %vm365, %v54, %v487
    %v491 = vsel %vm365, 0, %v489
    %v492 = vmul.f32 %v490, %v490
    %v493 = vmul.f32 %v492, -0.001358992
    %v494 = vadd.f32 %v493, 0.041655596
    %v495 = vmul.f32 %v492, %v494
    %v496 = vadd.f32 %v495, -0.4999988
    %v497 = vmul.f32 %v492, %v496
    %v498 = vadd.f32 1.0, %v497
    %v499 = vmul.f32 %v490, %v490
    %v500 = vmul.f32 %v499, -0.00019511016
    %v501 = vadd.f32 %v500, 0.008332121
    %v502 = vmul.f32 %v499, %v501
    %v503 = vadd.f32 %v502, -0.16666654
    %v504 = vmul.f32 %v499, %v503
    %v505 = vadd.f32 %v504, 1.0
    %v506 = vmul.f32 %v505, %v490
    %vm507 = vweird.f32 %v54
    %v508 = vand.u32 %v491, 3
    %vm509 = vcmp.lt.s32.totalorder %v508, 2
    %vm510 = vcmp.eq.s32.totalorder %v508, 0
    %v511 = vxor.u32 %v506, 2147483648
    %v512 = vsel %vm510, %v498, %v511
    %vm513 = vcmp.eq.s32.totalorder %v508, 2
    %v514 = vxor.u32 %v498, 2147483648
    %v515 = vsel %vm513, %v514, %v506
    %v516 = vsel %vm509, %v512, %v515
    %v517 = vsel %vm507, nan, %v516
    %v518 = vand.u32 2147483647, %v55
    %vm519 = vcmp.le.f32.partialorder %v518, 0.7853982
    %vm520 = vcmp.lt.s32.totalorder %v55, 0
    %v521 = vand.u32 %v55, 2139095040
    %v522 = vshrl.u32 %v521, 23
    %v523 = vsub.s32 %v522, 127
    %v524 = vand.u32 2147483647, %v55
    %v525 = vand.u32 %v524, 8388607
    %v526 = vor.u32 %v525, 8388608
    %v527 = vsub.s32 0, %v526
    %v528 = vadd.s32 %v523, 1
    %vm529 = vcmp.gt.s32.totalorder %v528, 0
    %v530 = vsel %vm529, %v528, 0
    %v531 = vshrl.u32 %v530, 5
    %v532 = vand.u32 %v530, 31
    %v533 = vsub.s32 32, %v532
    %v534 = vshrl.u32 683565275, %v533
    %v535 = vshll.u32 683565275, %v532
    %v536 = vshrl.u32 2475754826, %v533
    %v537 = vor.u32 %v535, %v536
    %v538 = vshll.u32 2475754826, %v532
    %v539 = vshrl.u32 2131351028, %v533
    %v540 = vor.u32 %v538, %v539
    %v541 = vshll.u32 2131351028, %v532
    %v542 = vshrl.u32 2102212464, %v533
    %v543 = vor.u32 %v541, %v542
    %v544 = vshll.u32 2102212464, %v532
    %v545 = vshrl.u32 920167782, %v533
    %v546 = vor.u32 %v544, %v545
    %v547 = vshll.u32 920167782, %v532
    %v548 = vshrl.u32 1326507024, %v533
    %v549 = vor.u32 %v547, %v548
    %vm550 = vcmp.lt.s32.totalorder %v531, 1
    %vm551 = vcmp.lt.s32.totalorder %v531, 2
    %vm552 = vcmp.lt.s32.totalorder %v531, 3
    %vm553 = vcmp.lt.s32.totalorder %v531, 4
    %v554 = vsel %vm550, %v534, %v537
    %v555 = vsel %vm553, %v543, 2102212464
    %v556 = vsel %vm552, %v540, %v555
    %v557 = vsel %vm551, %v554, %v556
    %v558 = vsel %vm550, %v537, %v540
    %v559 = vsel %vm553, %v546, 920167782
    %v560 = vsel %vm552, %v543, %v559
    %v561 = vsel %vm551, %v558, %v560
    %v562 = vsel %vm550, %v540, %v543
    %v563 = vsel %vm553, %v549, 1326507024
    %v564 = vsel %vm552, %v546, %v563
    %v565 = vsel %vm551, %v562, %v564
    %v566 = vshll.u32 %v526, 8
    %v567 = vand.u32 %v566, 65535
    %v568 = vshrl.u32 %v566, 16
    %v569 = vand.u32 %v565, 65535
    %v570 = vshrl.u32 %v565, 16
    %v571 = vmul.u32 %v567, %v569
    %v572 = vmul.u32 %v567, %v570
    %v573 = vmul.u32 %v568, %v569
    %v574 = vmul.u32 %v568, %v570
    %v575 = vshll.u32 %v572, 16
    %v576 = vshrl.u32 %v572, 16
    %v577 = vshll.u32 %v573, 16
    %v578 = vshrl.u32 %v573, 16
    %vm579 = vc.u32 %v571, %v575
    %v580 = vsel %vm579, 1, 0
    %v581 = vadd.s32 %v571, %v575
    %v582 = vadd.s32 %v574, %v580
    %vm583 = vc.u32 %v581, %v577
    %v584 = vsel %vm583, 1, 0
    %v585 = vadd.s32 %v581, %v577
    %v586 = vadd.s32 %v582, %v584
    %v587 = vadd.s32 %v586, %v576
    %v588 = vadd.s32 %v587, %v578
    %v589 = vand.u32 %v566, 65535
    %v590 = vshrl.u32 %v566, 16
    %v591 = vand.u32 %v561, 65535
    %v592 = vshrl.u32 %v561, 16
    %v593 = vmul.u32 %v589, %v591
    %v594 = vmul.u32 %v589, %v592
    %v595 = vmul.u32 %v590, %v591
    %v596 = vmul.u32 %v590, %v592
    %v597 = vshll.u32 %v594, 16
    %v598 = vshrl.u32 %v594, 16
    %v599 = vshll.u32 %v595, 16
    %v600 = vshrl.u32 %v595, 16
    %vm601 = vc.u32 %v593, %v597
    %v602 = vsel %vm601, 1, 0
    %v603 = vadd.s32 %v593, %v597
    %v604 = vadd.s32 %v596, %v602
    %vm605 = vc.u32 %v603, %v599
    %v606 = vsel %vm605, 1, 0
    %v607 = vadd.s32 %v603, %v599
    %v608 = vadd.s32 %v604, %v606
    %v609 = vadd.s32 %v608, %v598
    %v610 = vadd.s32 %v609, %v600
    %v611 = vmul.u32 %v566, %v557
    %v612 = vadd.s32 %v588, %v607
    %vm613 = vc.u32 %v588, %v607
    %v614 = vadd.s32 %v610, 1
    %v615 = vsel %vm613, %v614, %v610
    %v616 = vadd.s32 %v611, %v615
    %v617 = vadd.s32 %v616, 536870912
    %v618 = vshrl.u32 %v617, 30
    %v619 = vshll.u32 %v618, 30
    %v620 = vsub.s32 %v616, %v619
    %vm621 = vcmp.lt.s32.totalorder %v620, 0
    %v622 = vsub.s32 0, %v620
    %v623 = vsel %vm621, %v622, %v620
    %v624 = vclz %v623
    %v625 = vsub.s32 %v624, 2
    %vm626 = vcmp.gt.s32.totalorder 0, %v625
    %v627 = vsel %vm626, 0, %v625
    %v628 = vsub.s32 32, %v627
    %v629 = vshll.u32 %v620, %v627
    %v630 = vshrl.u32 %v612, %v628
    %v631 = vor.u32 %v629, %v630
    %v632 = vsub.s32 4294967266, %v627
    %v633 = vadd.s32 %v632, 127
    %v634 = vshll.u32 %v633, 23
    %v635 = vor.u32 4788187, %v634
    %v636 = vand.u32 2147483647, %v635
    %v638 = vcvt.s32.f32 %v631
    %v639 = vmul.f32 %v638, %v636
    %v640 = vxor.u32 %v639, 2147483648
    %v641 = vsel %vm520, %v640, %v639
    %v642 = vsub.s32 4, %v618
    %v643 = vsel %vm520, %v642, %v618
    %v644 = vsel %vm519, %v55, %v641
    %v645 = vsel %vm519, 0, %v643
    %v646 = vmul.f32 %v644, %v644
    %v647 = vmul.f32 %v646, -0.001358992
    %v648 = vadd.f32 %v647, 0.041655596
    %v649 = vmul.f32 %v646, %v648
    %v650 = vadd.f32 %v649, -0.4999988
    %v651 = vmul.f32 %v646, %v650
    %v652 = vadd.f32 1.0, %v651
    %v653 = vmul.f32 %v644, %v644
    %v654 = vmul.f32 %v653, -0.00019511016
    %v655 = vadd.f32 %v654, 0.008332121
    %v656 = vmul.f32 %v653, %v655
    %v657 = vadd.f32 %v656, -0.16666654
    %v658 = vmul.f32 %v653, %v657
    %v659 = vadd.f32 %v658, 1.0
    %v660 = vmul.f32 %v659, %v644
    %vm661 = vweird.f32 %v55
    %v662 = vand.u32 %v645, 3
    %vm663 = vcmp.lt.s32.totalorder %v662, 2
    %vm664 = vcmp.eq.s32.totalorder %v662, 0
    %v665 = vxor.u32 %v660, 2147483648
    %v666 = vsel %vm664, %v652, %v665
    %vm667 = vcmp.eq.s32.totalorder %v662, 2
    %v668 = vxor.u32 %v652, 2147483648
    %v669 = vsel %vm667, %v668, %v660
    %v670 = vsel %vm663, %v666, %v669
    %v671 = vsel %vm661, nan, %v670
    %v672 = vand.u32 2147483647, %v52
    %vm673 = vcmp.le.f32.partialorder %v672, 0.7853982
    %vm674 = vcmp.lt.s32.totalorder %v52, 0
    %v675 = vand.u32 %v52, 2139095040
    %v676 = vshrl.u32 %v675, 23
    %v677 = vsub.s32 %v676, 127
    %v678 = vand.u32 2147483647, %v52
    %v679 = vand.u32 %v678, 8388607
    %v680 = vor.u32 %v679, 8388608
    %v681 = vsub.s32 0, %v680
    %v682 = vadd.s32 %v677, 1
    %vm683 = vcmp.gt.s32.totalorder %v682, 0
    %v684 = vsel %vm683, %v682, 0
    %v685 = vshrl.u32 %v684, 5
    %v686 = vand.u32 %v684, 31
    %v687 = vsub.s32 32, %v686
    %v688 = vshrl.u32 683565275, %v687
    %v689 = vshll.u32 683565275, %v686
    %v690 = vshrl.u32 2475754826, %v687
    %v691 = vor.u32 %v689, %v690
    %v692 = vshll.u32 2475754826, %v686
    %v693 = vshrl.u32 2131351028, %v687
    %v694 = vor.u32 %v692, %v693
    %v695 = vshll.u32 2131351028, %v686
    %v696 = vshrl.u32 2102212464, %v687
    %v697 = vor.u32 %v695, %v696
    %v698 = vshll.u32 2102212464, %v686
    %v699 = vshrl.u32 920167782, %v687
    %v700 = vor.u32 %v698, %v699
    %v701 = vshll.u32 920167782, %v686
    %v702 = vshrl.u32 1326507024, %v687
    %v703 = vor.u32 %v701, %v702
    %vm704 = vcmp.lt.s32.totalorder %v685, 1
    %vm705 = vcmp.lt.s32.totalorder %v685, 2
    %vm706 = vcmp.lt.s32.totalorder %v685, 3
    %vm707 = vcmp.lt.s32.totalorder %v685, 4
    %v708 = vsel %vm704, %v688, %v691
    %v709 = vsel %vm707, %v697, 2102212464
    %v710 = vsel %vm706, %v694, %v709
    %v711 = vsel %vm705, %v708, %v710
    %v712 = vsel %vm704, %v691, %v694
    %v713 = vsel %vm707, %v700, 920167782
    %v714 = vsel %vm706, %v697, %v713
    %v715 = vsel %vm705, %v712, %v714
    %v716 = vsel %vm704, %v694, %v697
    %v717 = vsel %vm707, %v703, 1326507024
    %v718 = vsel %vm706, %v700, %v717
    %v719 = vsel %vm705, %v716, %v718
    %v720 = vshll.u32 %v680, 8
    %v721 = vand.u32 %v720, 65535
    %v722 = vshrl.u32 %v720, 16
    %v723 = vand.u32 %v719, 65535
    %v724 = vshrl.u32 %v719, 16
    %v725 = vmul.u32 %v721, %v723
    %v726 = vmul.u32 %v721, %v724
    %v727 = vmul.u32 %v722, %v723
    %v728 = vmul.u32 %v722, %v724
    %v729 = vshll.u32 %v726, 16
    %v730 = vshrl.u32 %v726, 16
    %v731 = vshll.u32 %v727, 16
    %v732 = vshrl.u32 %v727, 16
    %vm733 = vc.u32 %v725, %v729
    %v734 = vsel %vm733, 1, 0
    %v735 = vadd.s32 %v725, %v729
    %v736 = vadd.s32 %v728, %v734
    %vm737 = vc.u32 %v735, %v731
    %v738 = vsel %vm737, 1, 0
    %v739 = vadd.s32 %v735, %v731
    %v740 = vadd.s32 %v736, %v738
    %v741 = vadd.s32 %v740, %v730
    %v742 = vadd.s32 %v741, %v732
    %v743 = vand.u32 %v720, 65535
    %v744 = vshrl.u32 %v720, 16
    %v745 = vand.u32 %v715, 65535
    %v746 = vshrl.u32 %v715, 16
    %v747 = vmul.u32 %v743, %v745
    %v748 = vmul.u32 %v743, %v746
    %v749 = vmul.u32 %v744, %v745
    %v750 = vmul.u32 %v744, %v746
    %v751 = vshll.u32 %v748, 16
    %v752 = vshrl.u32 %v748, 16
    %v753 = vshll.u32 %v749, 16
    %v754 = vshrl.u32 %v749, 16
    %vm755 = vc.u32 %v747, %v751
    %v756 = vsel %vm755, 1, 0
    %v757 = vadd.s32 %v747, %v751
    %v758 = vadd.s32 %v750, %v756
    %vm759 = vc.u32 %v757, %v753
    %v760 = vsel %vm759, 1, 0
    %v761 = vadd.s32 %v757, %v753
    %v762 = vadd.s32 %v758, %v760
    %v763 = vadd.s32 %v762, %v752
    %v764 = vadd.s32 %v763, %v754
    %v765 = vmul.u32 %v720, %v711
    %v766 = vadd.s32 %v742, %v761
    %vm767 = vc.u32 %v742, %v761
    %v768 = vadd.s32 %v764, 1
    %v769 = vsel %vm767, %v768, %v764
    %v770 = vadd.s32 %v765, %v769
    %v771 = vadd.s32 %v770, 536870912
    %v772 = vshrl.u32 %v771, 30
    %v773 = vshll.u32 %v772, 30
    %v774 = vsub.s32 %v770, %v773
    %vm775 = vcmp.lt.s32.totalorder %v774, 0
    %v776 = vsub.s32 0, %v774
    %v777 = vsel %vm775, %v776, %v774
    %v778 = vclz %v777
    %v779 = vsub.s32 %v778, 2
    %vm780 = vcmp.gt.s32.totalorder 0, %v779
    %v781 = vsel %vm780, 0, %v779
    %v782 = vsub.s32 32, %v781
    %v783 = vshll.u32 %v774, %v781
    %v784 = vshrl.u32 %v766, %v782
    %v785 = vor.u32 %v783, %v784
    %v786 = vsub.s32 4294967266, %v781
    %v787 = vadd.s32 %v786, 127
    %v788 = vshll.u32 %v787, 23
    %v789 = vor.u32 4788187, %v788
    %v790 = vand.u32 2147483647, %v789
    %v792 = vcvt.s32.f32 %v785
    %v793 = vmul.f32 %v792, %v790
    %v794 = vxor.u32 %v793, 2147483648
    %v795 = vsel %vm674, %v794, %v793
    %v796 = vsub.s32 4, %v772
    %v797 = vsel %vm674, %v796, %v772
    %v798 = vsel %vm673, %v52, %v795
    %v799 = vsel %vm673, 0, %v797
    %v800 = vmul.f32 %v798, %v798
    %v801 = vmul.f32 %v800, -0.001358992
    %v802 = vadd.f32 %v801, 0.041655596
    %v803 = vmul.f32 %v800, %v802
    %v804 = vadd.f32 %v803, -0.4999988
    %v805 = vmul.f32 %v800, %v804
    %v806 = vadd.f32 1.0, %v805
    %v807 = vmul.f32 %v798, %v798
    %v808 = vmul.f32 %v807, -0.00019511016
    %v809 = vadd.f32 %v808, 0.008332121
    %v810 = vmul.f32 %v807, %v809
    %v811 = vadd.f32 %v810, -0.16666654
    %v812 = vmul.f32 %v807, %v811
    %v813 = vadd.f32 %v812, 1.0
    %v814 = vmul.f32 %v813, %v798
    %vm815 = vweird.f32 %v52
    %v816 = vadd.s32 %v799, 3
    %v817 = vand.u32 %v816, 3
    %vm818 = vcmp.lt.s32.totalorder %v817, 2
    %vm819 = vcmp.eq.s32.totalorder %v817, 0
    %v820 = vxor.u32 %v814, 2147483648
    %v821 = vsel %vm819, %v806, %v820
    %vm822 = vcmp.eq.s32.totalorder %v817, 2
    %v823 = vxor.u32 %v806, 2147483648
    %v824 = vsel %vm822, %v823, %v814
    %v825 = vsel %vm818, %v821, %v824
    %v826 = vsel %vm815, nan, %v825
    %v827 = vand.u32 2147483647, %v53
    %vm828 = vcmp.le.f32.partialorder %v827, 0.7853982
    %vm829 = vcmp.lt.s32.totalorder %v53, 0
    %v830 = vand.u32 %v53, 2139095040
    %v831 = vshrl.u32 %v830, 23
    %v832 = vsub.s32 %v831, 127
    %v833 = vand.u32 2147483647, %v53
    %v834 = vand.u32 %v833, 8388607
    %v835 = vor.u32 %v834, 8388608
    %v836 = vsub.s32 0, %v835
    %v837 = vadd.s32 %v832, 1
    %vm838 = vcmp.gt.s32.totalorder %v837, 0
    %v839 = vsel %vm838, %v837, 0
    %v840 = vshrl.u32 %v839, 5
    %v841 = vand.u32 %v839, 31
    %v842 = vsub.s32 32, %v841
    %v843 = vshrl.u32 683565275, %v842
    %v844 = vshll.u32 683565275, %v841
    %v845 = vshrl.u32 2475754826, %v842
    %v846 = vor.u32 %v844, %v845
    %v847 = vshll.u32 2475754826, %v841
    %v848 = vshrl.u32 2131351028, %v842
    %v849 = vor.u32 %v847, %v848
    %v850 = vshll.u32 2131351028, %v841
    %v851 = vshrl.u32 2102212464, %v842
    %v852 = vor.u32 %v850, %v851
    %v853 = vshll.u32 2102212464, %v841
    %v854 = vshrl.u32 920167782, %v842
    %v855 = vor.u32 %v853, %v854
    %v856 = vshll.u32 920167782, %v841
    %v857 = vshrl.u32 1326507024, %v842
    %v858 = vor.u32 %v856, %v857
    %vm859 = vcmp.lt.s32.totalorder %v840, 1
    %vm860 = vcmp.lt.s32.totalorder %v840, 2
    %vm861 = vcmp.lt.s32.totalorder %v840, 3
    %vm862 = vcmp.lt.s32.totalorder %v840, 4
    %v863 = vsel %vm859, %v843, %v846
    %v864 = vsel %vm862, %v852, 2102212464
    %v865 = vsel %vm861, %v849, %v864
    %v866 = vsel %vm860, %v863, %v865
    %v867 = vsel %vm859, %v846, %v849
    %v868 = vsel %vm862, %v855, 920167782
    %v869 = vsel %vm861, %v852, %v868
    %v870 = vsel %vm860, %v867, %v869
    %v871 = vsel %vm859, %v849, %v852
    %v872 = vsel %vm862, %v858, 1326507024
    %v873 = vsel %vm861, %v855, %v872
    %v874 = vsel %vm860, %v871, %v873
    %v875 = vshll.u32 %v835, 8
    %v876 = vand.u32 %v875, 65535
    %v877 = vshrl.u32 %v875, 16
    %v878 = vand.u32 %v874, 65535
    %v879 = vshrl.u32 %v874, 16
    %v880 = vmul.u32 %v876, %v878
    %v881 = vmul.u32 %v876, %v879
    %v882 = vmul.u32 %v877, %v878
    %v883 = vmul.u32 %v877, %v879
    %v884 = vshll.u32 %v881, 16
    %v885 = vshrl.u32 %v881, 16
    %v886 = vshll.u32 %v882, 16
    %v887 = vshrl.u32 %v882, 16
    %vm888 = vc.u32 %v880, %v884
    %v889 = vsel %vm888, 1, 0
    %v890 = vadd.s32 %v880, %v884
    %v891 = vadd.s32 %v883, %v889
    %vm892 = vc.u32 %v890, %v886
    %v893 = vsel %vm892, 1, 0
    %v894 = vadd.s32 %v890, %v886
    %v895 = vadd.s32 %v891, %v893
    %v896 = vadd.s32 %v895, %v885
    %v897 = vadd.s32 %v896, %v887
    %v898 = vand.u32 %v875, 65535
    %v899 = vshrl.u32 %v875, 16
    %v900 = vand.u32 %v870, 65535
    %v901 = vshrl.u32 %v870, 16
    %v902 = vmul.u32 %v898, %v900
    %v903 = vmul.u32 %v898, %v901
    %v904 = vmul.u32 %v899, %v900
    %v905 = vmul.u32 %v899, %v901
    %v906 = vshll.u32 %v903, 16
    %v907 = vshrl.u32 %v903, 16
    %v908 = vshll.u32 %v904, 16
    %v909 = vshrl.u32 %v904, 16
    %vm910 = vc.u32 %v902, %v906
    %v911 = vsel %vm910, 1, 0
    %v912 = vadd.s32 %v902, %v906
    %v913 = vadd.s32 %v905, %v911
    %vm914 = vc.u32 %v912, %v908
    %v915 = vsel %vm914, 1, 0
    %v916 = vadd.s32 %v912, %v908
    %v917 = vadd.s32 %v913, %v915
    %v918 = vadd.s32 %v917, %v907
    %v919 = vadd.s32 %v918, %v909
    %v920 = vmul.u32 %v875, %v866
    %v921 = vadd.s32 %v897, %v916
    %vm922 = vc.u32 %v897, %v916
    %v923 = vadd.s32 %v919, 1
    %v924 = vsel %vm922, %v923, %v919
    %v925 = vadd.s32 %v920, %v924
    %v926 = vadd.s32 %v925, 536870912
    %v927 = vshrl.u32 %v926, 30
    %v928 = vshll.u32 %v927, 30
    %v929 = vsub.s32 %v925, %v928
    %vm930 = vcmp.lt.s32.totalorder %v929, 0
    %v931 = vsub.s32 0, %v929
    %v932 = vsel %vm930, %v931, %v929
    %v933 = vclz %v932
    %v934 = vsub.s32 %v933, 2
    %vm935 = vcmp.gt.s32.totalorder 0, %v934
    %v936 = vsel %vm935, 0, %v934
    %v937 = vsub.s32 32, %v936
    %v938 = vshll.u32 %v929, %v936
    %v939 = vshrl.u32 %v921, %v937
    %v940 = vor.u32 %v938, %v939
    %v941 = vsub.s32 4294967266, %v936
    %v942 = vadd.s32 %v941, 127
    %v943 = vshll.u32 %v942, 23
    %v944 = vor.u32 4788187, %v943
    %v945 = vand.u32 2147483647, %v944
    %v947 = vcvt.s32.f32 %v940
    %v948 = vmul.f32 %v947, %v945
    %v949 = vxor.u32 %v948, 2147483648
    %v950 = vsel %vm829, %v949, %v948
    %v951 = vsub.s32 4, %v927
    %v952 = vsel %vm829, %v951, %v927
    %v953 = vsel %vm828, %v53, %v950
    %v954 = vsel %vm828, 0, %v952
    %v955 = vmul.f32 %v953, %v953
    %v956 = vmul.f32 %v955, -0.001358992
    %v957 = vadd.f32 %v956, 0.041655596
    %v958 = vmul.f32 %v955, %v957
    %v959 = vadd.f32 %v958, -0.4999988
    %v960 = vmul.f32 %v955, %v959
    %v961 = vadd.f32 1.0, %v960
    %v962 = vmul.f32 %v953, %v953
    %v963 = vmul.f32 %v962, -0.00019511016
    %v964 = vadd.f32 %v963, 0.008332121
    %v965 = vmul.f32 %v962, %v964
    %v966 = vadd.f32 %v965, -0.16666654
    %v967 = vmul.f32 %v962, %v966
    %v968 = vadd.f32 %v967, 1.0
    %v969 = vmul.f32 %v968, %v953
    %vm970 = vweird.f32 %v53
    %v971 = vadd.s32 %v954, 3
    %v972 = vand.u32 %v971, 3
    %vm973 = vcmp.lt.s32.totalorder %v972, 2
    %vm974 = vcmp.eq.s32.totalorder %v972, 0
    %v975 = vxor.u32 %v969, 2147483648
    %v976 = vsel %vm974, %v961, %v975
    %vm977 = vcmp.eq.s32.totalorder %v972, 2
    %v978 = vxor.u32 %v961, 2147483648
    %v979 = vsel %vm977, %v978, %v969
    %v980 = vsel %vm973, %v976, %v979
    %v981 = vsel %vm970, nan, %v980
    %v982 = vand.u32 2147483647, %v54
    %vm983 = vcmp.le.f32.partialorder %v982, 0.7853982
    %vm984 = vcmp.lt.s32.totalorder %v54, 0
    %v985 = vand.u32 %v54, 2139095040
    %v986 = vshrl.u32 %v985, 23
    %v987 = vsub.s32 %v986, 127
    %v988 = vand.u32 2147483647, %v54
    %v989 = vand.u32 %v988, 8388607
    %v990 = vor.u32 %v989, 8388608
    %v991 = vsub.s32 0, %v990
    %v992 = vadd.s32 %v987, 1
    %vm993 = vcmp.gt.s32.totalorder %v992, 0
    %v994 = vsel %vm993, %v992, 0
    %v995 = vshrl.u32 %v994, 5
    %v996 = vand.u32 %v994, 31
    %v997 = vsub.s32 32, %v996
    %v998 = vshrl.u32 683565275, %v997
    %v999 = vshll.u32 683565275, %v996
    %v1000 = vshrl.u32 2475754826, %v997
    %v1001 = vor.u32 %v999, %v1000
    %v1002 = vshll.u32 2475754826, %v996
    %v1003 = vshrl.u32 2131351028, %v997
    %v1004 = vor.u32 %v1002, %v1003
    %v1005 = vshll.u32 2131351028, %v996
    %v1006 = vshrl.u32 2102212464, %v997
    %v1007 = vor.u32 %v1005, %v1006
    %v1008 = vshll.u32 2102212464, %v996
    %v1009 = vshrl.u32 920167782, %v997
    %v1010 = vor.u32 %v1008, %v1009
    %v1011 = vshll.u32 920167782, %v996
    %v1012 = vshrl.u32 1326507024, %v997
    %v1013 = vor.u32 %v1011, %v1012
    %vm1014 = vcmp.lt.s32.totalorder %v995, 1
    %vm1015 = vcmp.lt.s32.totalorder %v995, 2
    %vm1016 = vcmp.lt.s32.totalorder %v995, 3
    %vm1017 = vcmp.lt.s32.totalorder %v995, 4
    %v1018 = vsel %vm1014, %v998, %v1001
    %v1019 = vsel %vm1017, %v1007, 2102212464
    %v1020 = vsel %vm1016, %v1004, %v1019
    %v1021 = vsel %vm1015, %v1018, %v1020
    %v1022 = vsel %vm1014, %v1001, %v1004
    %v1023 = vsel %vm1017, %v1010, 920167782
    %v1024 = vsel %vm1016, %v1007, %v1023
    %v1025 = vsel %vm1015, %v1022, %v1024
    %v1026 = vsel %vm1014, %v1004, %v1007
    %v1027 = vsel %vm1017, %v1013, 1326507024
    %v1028 = vsel %vm1016, %v1010, %v1027
    %v1029 = vsel %vm1015, %v1026, %v1028
    %v1030 = vshll.u32 %v990, 8
    %v1031 = vand.u32 %v1030, 65535
    %v1032 = vshrl.u32 %v1030, 16
    %v1033 = vand.u32 %v1029, 65535
    %v1034 = vshrl.u32 %v1029, 16
    %v1035 = vmul.u32 %v1031, %v1033
    %v1036 = vmul.u32 %v1031, %v1034
    %v1037 = vmul.u32 %v1032, %v1033
    %v1038 = vmul.u32 %v1032, %v1034
    %v1039 = vshll.u32 %v1036, 16
    %v1040 = vshrl.u32 %v1036, 16
    %v1041 = vshll.u32 %v1037, 16
    %v1042 = vshrl.u32 %v1037, 16
    %vm1043 = vc.u32 %v1035, %v1039
    %v1044 = vsel %vm1043, 1, 0
    %v1045 = vadd.s32 %v1035, %v1039
    %v1046 = vadd.s32 %v1038, %v1044
    %vm1047 = vc.u32 %v1045, %v1041
    %v1048 = vsel %vm1047, 1, 0
    %v1049 = vadd.s32 %v1045, %v1041
    %v1050 = vadd.s32 %v1046, %v1048
    %v1051 = vadd.s32 %v1050, %v1040
    %v1052 = vadd.s32 %v1051, %v1042
    %v1053 = vand.u32 %v1030, 65535
    %v1054 = vshrl.u32 %v1030, 16
    %v1055 = vand.u32 %v1025, 65535
    %v1056 = vshrl.u32 %v1025, 16
    %v1057 = vmul.u32 %v1053, %v1055
    %v1058 = vmul.u32 %v1053, %v1056
    %v1059 = vmul.u32 %v1054, %v1055
    %v1060 = vmul.u32 %v1054, %v1056
    %v1061 = vshll.u32 %v1058, 16
    %v1062 = vshrl.u32 %v1058, 16
    %v1063 = vshll.u32 %v1059, 16
    %v1064 = vshrl.u32 %v1059, 16
    %vm1065 = vc.u32 %v1057, %v1061
    %v1066 = vsel %vm1065, 1, 0
    %v1067 = vadd.s32 %v1057, %v1061
    %v1068 = vadd.s32 %v1060, %v1066
    %vm1069 = vc.u32 %v1067, %v1063
    %v1070 = vsel %vm1069, 1, 0
    %v1071 = vadd.s32 %v1067, %v1063
    %v1072 = vadd.s32 %v1068, %v1070
    %v1073 = vadd.s32 %v1072, %v1062
    %v1074 = vadd.s32 %v1073, %v1064
    %v1075 = vmul.u32 %v1030, %v1021
    %v1076 = vadd.s32 %v1052, %v1071
    %vm1077 = vc.u32 %v1052, %v1071
    %v1078 = vadd.s32 %v1074, 1
    %v1079 = vsel %vm1077, %v1078, %v1074
    %v1080 = vadd.s32 %v1075, %v1079
    %v1081 = vadd.s32 %v1080, 536870912
    %v1082 = vshrl.u32 %v1081, 30
    %v1083 = vshll.u32 %v1082, 30
    %v1084 = vsub.s32 %v1080, %v1083
    %vm1085 = vcmp.lt.s32.totalorder %v1084, 0
    %v1086 = vsub.s32 0, %v1084
    %v1087 = vsel %vm1085, %v1086, %v1084
    %v1088 = vclz %v1087
    %v1089 = vsub.s32 %v1088, 2
    %vm1090 = vcmp.gt.s32.totalorder 0, %v1089
    %v1091 = vsel %vm1090, 0, %v1089
    %v1092 = vsub.s32 32, %v1091
    %v1093 = vshll.u32 %v1084, %v1091
    %v1094 = vshrl.u32 %v1076, %v1092
    %v1095 = vor.u32 %v1093, %v1094
    %v1096 = vsub.s32 4294967266, %v1091
    %v1097 = vadd.s32 %v1096, 127
    %v1098 = vshll.u32 %v1097, 23
    %v1099 = vor.u32 4788187, %v1098
    %v1100 = vand.u32 2147483647, %v1099
    %v1102 = vcvt.s32.f32 %v1095
    %v1103 = vmul.f32 %v1102, %v1100
    %v1104 = vxor.u32 %v1103, 2147483648
    %v1105 = vsel %vm984, %v1104, %v1103
    %v1106 = vsub.s32 4, %v1082
    %v1107 = vsel %vm984, %v1106, %v1082
    %v1108 = vsel %vm983, %v54, %v1105
    %v1109 = vsel %vm983, 0, %v1107
    %v1110 = vmul.f32 %v1108, %v1108
    %v1111 = vmul.f32 %v1110, -0.001358992
    %v1112 = vadd.f32 %v1111, 0.041655596
    %v1113 = vmul.f32 %v1110, %v1112
    %v1114 = vadd.f32 %v1113, -0.4999988
    %v1115 = vmul.f32 %v1110, %v1114
    %v1116 = vadd.f32 1.0, %v1115
    %v1117 = vmul.f32 %v1108, %v1108
    %v1118 = vmul.f32 %v1117, -0.00019511016
    %v1119 = vadd.f32 %v1118, 0.008332121
    %v1120 = vmul.f32 %v1117, %v1119
    %v1121 = vadd.f32 %v1120, -0.16666654
    %v1122 = vmul.f32 %v1117, %v1121
    %v1123 = vadd.f32 %v1122, 1.0
    %v1124 = vmul.f32 %v1123, %v1108
    %vm1125 = vweird.f32 %v54
    %v1126 = vadd.s32 %v1109, 3
    %v1127 = vand.u32 %v1126, 3
    %vm1128 = vcmp.lt.s32.totalorder %v1127, 2
    %vm1129 = vcmp.eq.s32.totalorder %v1127, 0
    %v1130 = vxor.u32 %v1124, 2147483648
    %v1131 = vsel %vm1129, %v1116, %v1130
    %vm1132 = vcmp.eq.s32.totalorder %v1127, 2
    %v1133 = vxor.u32 %v1116, 2147483648
    %v1134 = vsel %vm1132, %v1133, %v1124
    %v1135 = vsel %vm1128, %v1131, %v1134
    %v1136 = vsel %vm1125, nan, %v1135
    %v1137 = vand.u32 2147483647, %v55
    %vm1138 = vcmp.le.f32.partialorder %v1137, 0.7853982
    %vm1139 = vcmp.lt.s32.totalorder %v55, 0
    %v1140 = vand.u32 %v55, 2139095040
    %v1141 = vshrl.u32 %v1140, 23
    %v1142 = vsub.s32 %v1141, 127
    %v1143 = vand.u32 2147483647, %v55
    %v1144 = vand.u32 %v1143, 8388607
    %v1145 = vor.u32 %v1144, 8388608
    %v1146 = vsub.s32 0, %v1145
    %v1147 = vadd.s32 %v1142, 1
    %vm1148 = vcmp.gt.s32.totalorder %v1147, 0
    %v1149 = vsel %vm1148, %v1147, 0
    %v1150 = vshrl.u32 %v1149, 5
    %v1151 = vand.u32 %v1149, 31
    %v1152 = vsub.s32 32, %v1151
    %v1153 = vshrl.u32 683565275, %v1152
    %v1154 = vshll.u32 683565275, %v1151
    %v1155 = vshrl.u32 2475754826, %v1152
    %v1156 = vor.u32 %v1154, %v1155
    %v1157 = vshll.u32 2475754826, %v1151
    %v1158 = vshrl.u32 2131351028, %v1152
    %v1159 = vor.u32 %v1157, %v1158
    %v1160 = vshll.u32 2131351028, %v1151
    %v1161 = vshrl.u32 2102212464, %v1152
    %v1162 = vor.u32 %v1160, %v1161
    %v1163 = vshll.u32 2102212464, %v1151
    %v1164 = vshrl.u32 920167782, %v1152
    %v1165 = vor.u32 %v1163, %v1164
    %v1166 = vshll.u32 920167782, %v1151
    %v1167 = vshrl.u32 1326507024, %v1152
    %v1168 = vor.u32 %v1166, %v1167
    %vm1169 = vcmp.lt.s32.totalorder %v1150, 1
    %vm1170 = vcmp.lt.s32.totalorder %v1150, 2
    %vm1171 = vcmp.lt.s32.totalorder %v1150, 3
    %vm1172 = vcmp.lt.s32.totalorder %v1150, 4
    %v1173 = vsel %vm1169, %v1153, %v1156
    %v1174 = vsel %vm1172, %v1162, 2102212464
    %v1175 = vsel %vm1171, %v1159, %v1174
    %v1176 = vsel %vm1170, %v1173, %v1175
    %v1177 = vsel %vm1169, %v1156, %v1159
    %v1178 = vsel %vm1172, %v1165, 920167782
    %v1179 = vsel %vm1171, %v1162, %v1178
    %v1180 = vsel %vm1170, %v1177, %v1179
    %v1181 = vsel %vm1169, %v1159, %v1162
    %v1182 = vsel %vm1172, %v1168, 1326507024
    %v1183 = vsel %vm1171, %v1165, %v1182
    %v1184 = vsel %vm1170, %v1181, %v1183
    %v1185 = vshll.u32 %v1145, 8
    %v1186 = vand.u32 %v1185, 65535
    %v1187 = vshrl.u32 %v1185, 16
    %v1188 = vand.u32 %v1184, 65535
    %v1189 = vshrl.u32 %v1184, 16
    %v1190 = vmul.u32 %v1186, %v1188
    %v1191 = vmul.u32 %v1186, %v1189
    %v1192 = vmul.u32 %v1187, %v1188
    %v1193 = vmul.u32 %v1187, %v1189
    %v1194 = vshll.u32 %v1191, 16
    %v1195 = vshrl.u32 %v1191, 16
    %v1196 = vshll.u32 %v1192, 16
    %v1197 = vshrl.u32 %v1192, 16
    %vm1198 = vc.u32 %v1190, %v1194
    %v1199 = vsel %vm1198, 1, 0
    %v1200 = vadd.s32 %v1190, %v1194
    %v1201 = vadd.s32 %v1193, %v1199
    %vm1202 = vc.u32 %v1200, %v1196
    %v1203 = vsel %vm1202, 1, 0
    %v1204 = vadd.s32 %v1200, %v1196
    %v1205 = vadd.s32 %v1201, %v1203
    %v1206 = vadd.s32 %v1205, %v1195
    %v1207 = vadd.s32 %v1206, %v1197
    %v1208 = vand.u32 %v1185, 65535
    %v1209 = vshrl.u32 %v1185, 16
    %v1210 = vand.u32 %v1180, 65535
    %v1211 = vshrl.u32 %v1180, 16
    %v1212 = vmul.u32 %v1208, %v1210
    %v1213 = vmul.u32 %v1208, %v1211
    %v1214 = vmul.u32 %v1209, %v1210
    %v1215 = vmul.u32 %v1209, %v1211
    %v1216 = vshll.u32 %v1213, 16
    %v1217 = vshrl.u32 %v1213, 16
    %v1218 = vshll.u32 %v1214, 16
    %v1219 = vshrl.u32 %v1214, 16
    %vm1220 = vc.u32 %v1212, %v1216
    %v1221 = vsel %vm1220, 1, 0
    %v1222 = vadd.s32 %v1212, %v1216
    %v1223 = vadd.s32 %v1215, %v1221
    %vm1224 = vc.u32 %v1222, %v1218
    %v1225 = vsel %vm1224, 1, 0
    %v1226 = vadd.s32 %v1222, %v1218
    %v1227 = vadd.s32 %v1223, %v1225
    %v1228 = vadd.s32 %v1227, %v1217
    %v1229 = vadd.s32 %v1228, %v1219
    %v1230 = vmul.u32 %v1185, %v1176
    %v1231 = vadd.s32 %v1207, %v1226
    %vm1232 = vc.u32 %v1207, %v1226
    %v1233 = vadd.s32 %v1229, 1
    %v1234 = vsel %vm1232, %v1233, %v1229
    %v1235 = vadd.s32 %v1230, %v1234
    %v1236 = vadd.s32 %v1235, 536870912
    %v1237 = vshrl.u32 %v1236, 30
    %v1238 = vshll.u32 %v1237, 30
    %v1239 = vsub.s32 %v1235, %v1238
    %vm1240 = vcmp.lt.s32.totalorder %v1239, 0
    %v1241 = vsub.s32 0, %v1239
    %v1242 = vsel %vm1240, %v1241, %v1239
    %v1243 = vclz %v1242
    %v1244 = vsub.s32 %v1243, 2
    %vm1245 = vcmp.gt.s32.totalorder 0, %v1244
    %v1246 = vsel %vm1245, 0, %v1244
    %v1247 = vsub.s32 32, %v1246
    %v1248 = vshll.u32 %v1239, %v1246
    %v1249 = vshrl.u32 %v1231, %v1247
    %v1250 = vor.u32 %v1248, %v1249
    %v1251 = vsub.s32 4294967266, %v1246
    %v1252 = vadd.s32 %v1251, 127
    %v1253 = vshll.u32 %v1252, 23
    %v1254 = vor.u32 4788187, %v1253
    %v1255 = vand.u32 2147483647, %v1254
    %v1257 = vcvt.s32.f32 %v1250
    %v1258 = vmul.f32 %v1257, %v1255
    %v1259 = vxor.u32 %v1258, 2147483648
    %v1260 = vsel %vm1139, %v1259, %v1258
    %v1261 = vsub.s32 4, %v1237
    %v1262 = vsel %vm1139, %v1261, %v1237
    %v1263 = vsel %vm1138, %v55, %v1260
    %v1264 = vsel %vm1138, 0, %v1262
    %v1265 = vmul.f32 %v1263, %v1263
    %v1266 = vmul.f32 %v1265, -0.001358992
    %v1267 = vadd.f32 %v1266, 0.041655596
    %v1268 = vmul.f32 %v1265, %v1267
    %v1269 = vadd.f32 %v1268, -0.4999988
    %v1270 = vmul.f32 %v1265, %v1269
    %v1271 = vadd.f32 1.0, %v1270
    %v1272 = vmul.f32 %v1263, %v1263
    %v1273 = vmul.f32 %v1272, -0.00019511016
    %v1274 = vadd.f32 %v1273, 0.008332121
    %v1275 = vmul.f32 %v1272, %v1274
    %v1276 = vadd.f32 %v1275, -0.16666654
    %v1277 = vmul.f32 %v1272, %v1276
    %v1278 = vadd.f32 %v1277, 1.0
    %v1279 = vmul.f32 %v1278, %v1263
    %vm1280 = vweird.f32 %v55
    %v1281 = vadd.s32 %v1264, 3
    %v1282 = vand.u32 %v1281, 3
    %vm1283 = vcmp.lt.s32.totalorder %v1282, 2
    %vm1284 = vcmp.eq.s32.totalorder %v1282, 0
    %v1285 = vxor.u32 %v1279, 2147483648
    %v1286 = vsel %vm1284, %v1271, %v1285
    %vm1287 = vcmp.eq.s32.totalorder %v1282, 2
    %v1288 = vxor.u32 %v1271, 2147483648
    %v1289 = vsel %vm1287, %v1288, %v1279
    %v1290 = vsel %vm1283, %v1286, %v1289
    %v1291 = vsel %vm1280, nan, %v1290
    %1296 = vrot.lane.b32.xlu0 %v209, 32
    %v1297 = vpop.permute.xlu0 %1296
    %1298 = vrot.lane.b32.xlu0 %v363, 32
    %v1299 = vpop.permute.xlu0 %1298
    %1300 = vrot.lane.b32.xlu0 %v517, 32
    %v1301 = vpop.permute.xlu0 %1300
    %1302 = vrot.lane.b32.xlu0 %v671, 32
    %v1303 = vpop.permute.xlu0 %1302
    %1308 = vrot.lane.b32.xlu0 %v209, 64
    %v1309 = vpop.permute.xlu0 %1308
    %1310 = vrot.lane.b32.xlu0 %v363, 64
    %v1311 = vpop.permute.xlu0 %1310
    %1312 = vrot.lane.b32.xlu0 %v517, 64
    %v1313 = vpop.permute.xlu0 %1312
    %1314 = vrot.lane.b32.xlu0 %v671, 64
    %v1315 = vpop.permute.xlu0 %1314
    %1320 = vrot.lane.b32.xlu0 %v209, 96
    %v1321 = vpop.permute.xlu0 %1320
    %1322 = vrot.lane.b32.xlu0 %v363, 96
    %v1323 = vpop.permute.xlu0 %1322
    %1324 = vrot.lane.b32.xlu0 %v517, 96
    %v1325 = vpop.permute.xlu0 %1324
    %1326 = vrot.lane.b32.xlu0 %v671, 96
    %v1327 = vpop.permute.xlu0 %1326
    %vm1332 = vcmask 261120
    %v1333 = vsel %vm1332, %v209, %v1297
    %v1334 = vsel %vm1332, %v363, %v1299
    %v1335 = vsel %vm1332, %v517, %v1301
    %v1336 = vsel %vm1332, %v671, %v1303
    %vm1337 = vcmask 523264
    %v1338 = vsel %vm1337, %v1333, %v1297
    %v1339 = vsel %vm1337, %v1334, %v1299
    %v1340 = vsel %vm1337, %v1335, %v1301
    %v1341 = vsel %vm1337, %v1336, %v1303
    %vm1342 = vcmask 785408
    %v1343 = vsel %vm1342, %v1338, %v1309
    %v1344 = vsel %vm1342, %v1339, %v1311
    %v1345 = vsel %vm1342, %v1340, %v1313
    %v1346 = vsel %vm1342, %v1341, %v1315
    %v1347 = vsel %vm1332, %v1309, %v1321
    %v1348 = vsel %vm1332, %v1311, %v1323
    %v1349 = vsel %vm1332, %v1313, %v1325
    %v1350 = vsel %vm1332, %v1315, %v1327
    %v1351 = vsel %vm1337, %v1347, %v1321
    %v1352 = vsel %vm1337, %v1348, %v1323
    %v1353 = vsel %vm1337, %v1349, %v1325
    %v1354 = vsel %vm1337, %v1350, %v1327
    %v1355 = vsel %vm1342, %v1351, %v209
    %v1356 = vsel %vm1342, %v1352, %v363
    %v1357 = vsel %vm1342, %v1353, %v517
    %v1358 = vsel %vm1342, %v1354, %v671
    %1359 = vst [vmem:[#allocation5] sm:$0xff] %v1343
    %1360 = vst [vmem:[#allocation5 + $0x8] sm:$0xff] %v1355
    %1361 = vst [vmem:[#allocation5 + $0x10] sm:$0xff] %v1344
    %1362 = vst [vmem:[#allocation5 + $0x18] sm:$0xff] %v1356
    %1363 = vst [vmem:[#allocation5 + $0x20] sm:$0xff] %v1345
    %1364 = vst [vmem:[#allocation5 + $0x28] sm:$0xff] %v1357
    %1365 = vst [vmem:[#allocation5 + $0x30] sm:$0xff] %v1346
    %1366 = vst [vmem:[#allocation5 + $0x38] sm:$0xff] %v1358
    %1371 = vrot.lane.b32.xlu0 %v826, 32
    %v1372 = vpop.permute.xlu0 %1371
    %1373 = vrot.lane.b32.xlu0 %v981, 32
    %v1374 = vpop.permute.xlu0 %1373
    %1375 = vrot.lane.b32.xlu0 %v1136, 32
    %v1376 = vpop.permute.xlu0 %1375
    %1377 = vrot.lane.b32.xlu0 %v1291, 32
    %v1378 = vpop.permute.xlu0 %1377
    %1383 = vrot.lane.b32.xlu0 %v826, 64
    %v1384 = vpop.permute.xlu0 %1383
    %1385 = vrot.lane.b32.xlu0 %v981, 64
    %v1386 = vpop.permute.xlu0 %1385
    %1387 = vrot.lane.b32.xlu0 %v1136, 64
    %v1388 = vpop.permute.xlu0 %1387
    %1389 = vrot.lane.b32.xlu0 %v1291, 64
    %v1390 = vpop.permute.xlu0 %1389
    %1395 = vrot.lane.b32.xlu0 %v826, 96
    %v1396 = vpop.permute.xlu0 %1395
    %1397 = vrot.lane.b32.xlu0 %v981, 96
    %v1398 = vpop.permute.xlu0 %1397
    %1399 = vrot.lane.b32.xlu0 %v1136, 96
    %v1400 = vpop.permute.xlu0 %1399
    %1401 = vrot.lane.b32.xlu0 %v1291, 96
    %v1402 = vpop.permute.xlu0 %1401
    %v1407 = vsel %vm1332, %v826, %v1372
    %v1408 = vsel %vm1332, %v981, %v1374
    %v1409 = vsel %vm1332, %v1136, %v1376
    %v1410 = vsel %vm1332, %v1291, %v1378
    %v1411 = vsel %vm1337, %v1407, %v1372
    %v1412 = vsel %vm1337, %v1408, %v1374
    %v1413 = vsel %vm1337, %v1409, %v1376
    %v1414 = vsel %vm1337, %v1410, %v1378
    %v1415 = vsel %vm1342, %v1411, %v1384
    %v1416 = vsel %vm1342, %v1412, %v1386
    %v1417 = vsel %vm1342, %v1413, %v1388
    %v1418 = vsel %vm1342, %v1414, %v1390
    %v1419 = vsel %vm1332, %v1384, %v1396
    %v1420 = vsel %vm1332, %v1386, %v1398
    %v1421 = vsel %vm1332, %v1388, %v1400
    %v1422 = vsel %vm1332, %v1390, %v1402
    %v1423 = vsel %vm1337, %v1419, %v1396
    %v1424 = vsel %vm1337, %v1420, %v1398
    %v1425 = vsel %vm1337, %v1421, %v1400
    %v1426 = vsel %vm1337, %v1422, %v1402
    %v1427 = vsel %vm1342, %v1423, %v826
    %v1428 = vsel %vm1342, %v1424, %v981
    %v1429 = vsel %vm1342, %v1425, %v1136
    %v1430 = vsel %vm1342, %v1426, %v1291
    %1431 = vst [vmem:[#allocation6] sm:$0xff] %v1415
    %1432 = vst [vmem:[#allocation6 + $0x8] sm:$0xff] %v1427
    %1433 = vst [vmem:[#allocation6 + $0x10] sm:$0xff] %v1416
    %1434 = vst [vmem:[#allocation6 + $0x18] sm:$0xff] %v1428
    %1435 = vst [vmem:[#allocation6 + $0x20] sm:$0xff] %v1417
    %1436 = vst [vmem:[#allocation6 + $0x28] sm:$0xff] %v1429
    %1437 = vst [vmem:[#allocation6 + $0x30] sm:$0xff] %v1418
    %1438 = vst [vmem:[#allocation6 + $0x38] sm:$0xff] %v1430
    // Predicated region
    $region10: #{tpu_custom_call.1} parent=1 // pred_check
      _
    $region11: #{tpu_custom_call.1} parent=1 // pred_check_branch
      %1440 = sbr.rel (0) target = $region13
    $region12: #{tpu_custom_call.1} parent=1 // pred_region
      %1442 = vsyncadd [#allocation4], 0
      %s1443 = sshll.u32 [#allocation5], 4
      %s1444 = int_to_ptr.vmem [resolvable:$true] %s1443
      %s1445 = sshll.u32 %s1, 4
      %s1446 = int_to_ptr.hbm [resolvable:$true] %s1445
      %1451 = dma.vmem_to_hbm [thread:$0]  %s1444, 1024, %s1446, [#allocation4], 256, 256, 16
    $region13: #{tpu_custom_call.1} parent=1 // pred_fallthru
      _
    // Predicated region
    $region14: #{tpu_custom_call.1} parent=1 // pred_check
      _
    $region15: #{tpu_custom_call.1} parent=1 // pred_check_branch
      %1453 = sbr.rel (0) target = $region17
    $region16: #{tpu_custom_call.1} parent=1 // pred_region
      %1455 = vsyncadd [#allocation7], 0
      %s1456 = sshll.u32 [#allocation6], 4
      %s1457 = int_to_ptr.vmem [resolvable:$true] %s1456
      %s1458 = sshll.u32 %s2, 4
      %s1459 = int_to_ptr.hbm [resolvable:$true] %s1458
      %1464 = dma.vmem_to_hbm [thread:$0]  %s1457, 1024, %s1459, [#allocation7], 256, 256, 16
    $region17: #{tpu_custom_call.1} parent=1 // pred_fallthru
      _
    // Predicated region
    $region18: #{tpu_custom_call.1} parent=1 // pred_check
      _
    $region19: #{tpu_custom_call.1} parent=1 // pred_check_branch
      %1466 = sbr.rel (0) target = $region21
    $region20: #{tpu_custom_call.1} parent=1 // pred_region
      %1468 = dma.done [#allocation4], 1024
    $region21: #{tpu_custom_call.1} parent=1 // pred_fallthru
      _
    // Predicated region
    $region22: #{tpu_custom_call.1} parent=1 // pred_check
      _
    $region23: #{tpu_custom_call.1} parent=1 // pred_check_branch
      %1470 = sbr.rel (0) target = $region25
    $region24: #{tpu_custom_call.1} parent=1 // pred_region
      %1472 = dma.done [#allocation7], 1024
    $region25: #{tpu_custom_call.1} parent=1 // pred_fallthru
      _
    %1473 = vsyncpa [#allocation3], 1
    %1474 = vsyncpa [#allocation4], 1
    %1475 = vsyncpa [#allocation7], 1

</llo_original>
